<compile_context>
chip_gen: v6e
topology: v6e:2x2x1
jax: 0.10.0
libtpu: 0.0.40
codegen_flags: <defaults>
</compile_context>

<pallas_src>
import functools

import jax
import jax.numpy as jnp
from jax.experimental import pallas as pl
from jax.experimental.pallas import tpu as pltpu


def _round_up(a: int, m: int) -> int:
    return (a + m - 1) // m * m


def _block_diag(a, b):
    za = jnp.zeros((a.shape[0], b.shape[1]), a.dtype)
    zb = jnp.zeros((b.shape[0], a.shape[1]), b.dtype)
    return jnp.concatenate(
        [jnp.concatenate([a, za], axis=1), jnp.concatenate([zb, b], axis=1)], axis=0)


# ----------------------------------------------------------------------------
# Kernel: folded/fused 3-layer MLP on a (Dcat, TN) activation tile (tokens on lanes).
# fx rows are [x ; F_features]; the fused layer-3 output rows are [t ; s].
# ----------------------------------------------------------------------------
def _residual_block_kernel(fx_ref, w1_ref, w2_ref, w3_ref, b_ref, out_ref, *,
                           dx, n_h, n_o, use_difference, include_scaling):
    fx = fx_ref[...]                                   # (Dcat, TN) bf16

    b1 = b_ref[0:n_h, :]                               # (n_h, 1) f32, broadcasts over lanes
    b2 = b_ref[n_h:2 * n_h, :]
    b3 = b_ref[2 * n_h:2 * n_h + n_o, :]

    # layer 1 (input_proj / feature_proj already folded into w1)
    h = jnp.dot(w1_ref[...], fx, preferred_element_type=jnp.float32) + b1
    h = jnp.maximum(h, 0.0).astype(jnp.bfloat16)
    # layer 2 (block-diagonal fusion of map_t / map_s hidden layers)
    h = jnp.dot(w2_ref[...], h, preferred_element_type=jnp.float32) + b2
    h = jnp.maximum(h, 0.0).astype(jnp.bfloat16)
    # layer 3 -> stacked [t ; s]
    ts = jnp.dot(w3_ref[...], h, preferred_element_type=jnp.float32) + b3   # (n_o, TN) f32

    t = ts[0:dx, :]
    if use_difference:
        y = fx[0:dx, :].astype(jnp.float32) - t        # x lives in rows 0:dx of fx
    else:
        y = t
    if include_scaling:
        s = jnp.clip(ts[dx:2 * dx, :], -2.0, 2.0)      # Hardtanh(-2, 2)
        y = y * jnp.exp(-s)
    out_ref[...] = y.astype(out_ref.dtype)


# ----------------------------------------------------------------------------
# Trace-time weight folding / fusion.
#   h1 = relu([fp, xp] @ Wt1 + bt1) with fp = F@Wf+bf, xp = x@Wx+bx
#      = relu(F @ (Wf@Wt1[:Pf]) + x @ (Wx@Wt1[Pf:]) + (bf@Wt1[:Pf] + bx@Wt1[Pf:] + bt1))
# map_t and map_s are fused by stacking on the hidden/output axis (block-diagonal W2, W3).
# Returned weights are transposed for the tokens-on-lanes layout (W @ activations).
# ----------------------------------------------------------------------------
def _fold_params(p, *, include_scaling, weight_dtype):
    with jax.default_matmul_precision("highest"):
        wf, bf = p["wf"], p["bf"]
        wx, bx = p["wx"], p["bx"]
        pf = wf.shape[1]

        def fold_first(w1, b1):
            w1f, w1x = w1[:pf], w1[pf:]
            return wf @ w1f, wx @ w1x, bf @ w1f + bx @ w1x + b1

        aF_t, ax_t, c_t = fold_first(p["wt1"], p["bt1"])
        if include_scaling:
            aF_s, ax_s, c_s = fold_first(p["ws1"], p["bs1"])
            aF = jnp.concatenate([aF_t, aF_s], axis=1)
            ax = jnp.concatenate([ax_t, ax_s], axis=1)
            c1 = jnp.concatenate([c_t, c_s])
            w2 = _block_diag(p["wt2"], p["ws2"])
            b2 = jnp.concatenate([p["bt2"], p["bs2"]])
            w3 = _block_diag(p["wt3"], p["ws3"])
            b3 = jnp.concatenate([p["bt3"], p["bs3"]])
        else:
            aF, ax, c1 = aF_t, ax_t, c_t
            w2, b2 = p["wt2"], p["bt2"]
            w3, b3 = p["wt3"], p["bt3"]

        # activation rows are [x ; F] -> layer-1 weight columns ordered the same way
        w1_k = jnp.concatenate([ax, aF], axis=0).T          # (n_h, Dx+Df)
        w2_k = w2.T                                         # (n_h, n_h)
        w3_k = w3.T                                         # (n_o, n_h)
        bias = jnp.concatenate([c1, b2, b3]).reshape(-1, 1)  # single bias slab

    return (w1_k.astype(weight_dtype), w2_k.astype(weight_dtype),
            w3_k.astype(weight_dtype), bias.astype(jnp.float32))


# ----------------------------------------------------------------------------
# Wrapper: transpose to tokens-on-lanes, pad tokens to the tile, launch gridded kernel.
# ----------------------------------------------------------------------------
def residual_block_forward(F, x, params, *, use_difference=True, include_scaling=True,
                           tile_n=4096):
    B, S, df = F.shape
    dx = x.shape[-1]
    N = B * S
    dcat = dx + df

    w1, w2, w3, bias = _fold_params(params, include_scaling=include_scaling,
                                    weight_dtype=jnp.bfloat16)
    n_h = int(w1.shape[0])
    n_o = int(w3.shape[0])

    # token tile: multiple of 128 lanes, clamped for small inputs
    tn = max(128, min(_round_up(tile_n, 128), _round_up(N, 128)))
    n_pad = _round_up(N, tn)

    # activation slab, rows = [x ; F], cols = tokens (lane axis), bf16, zero-padded tokens
    fx = jnp.concatenate([x.reshape(N, dx).T, F.reshape(N, df).T], axis=0)
    fx = jnp.pad(fx.astype(jnp.bfloat16), ((0, 0), (0, n_pad - N)))

    kernel = functools.partial(
        _residual_block_kernel, dx=dx, n_h=n_h, n_o=n_o,
        use_difference=use_difference, include_scaling=include_scaling)

    flops = 2 * n_pad * (dcat * n_h + n_h * n_h + n_h * n_o)
    transcendentals = n_pad * dx if include_scaling else 0
    bytes_accessed = (fx.size * 2 + n_pad * dx * 4
                      + (w1.size + w2.size + w3.size) * 2 + bias.size * 4)

    out = pl.pallas_call(
        kernel,
        out_shape=jax.ShapeDtypeStruct((dx, n_pad), jnp.float32),
        grid_spec=pltpu.PrefetchScalarGridSpec(
            num_scalar_prefetch=0,
            grid=(n_pad // tn,),
            in_specs=[
                pl.BlockSpec((dcat, tn), lambda i: (0, i)),            # streamed activations
                pl.BlockSpec((n_h, dcat), lambda i: (0, 0)),           # resident fused W1
                pl.BlockSpec((n_h, n_h), lambda i: (0, 0)),            # resident fused W2
                pl.BlockSpec((n_o, n_h), lambda i: (0, 0)),            # resident fused W3
                pl.BlockSpec((2 * n_h + n_o, 1), lambda i: (0, 0)),    # resident bias slab
            ],
            out_specs=pl.BlockSpec((dx, tn), lambda i: (0, i)),        # lane-dense output
        ),
        compiler_params=pltpu.CompilerParams(
            dimension_semantics=("parallel",),          # dual-TC sharding on v7x
            vmem_limit_bytes=32 * 1024 * 1024,
        ),
        cost_estimate=pl.CostEstimate(
            flops=int(flops),
            transcendentals=int(transcendentals),
            bytes_accessed=int(bytes_accessed),
        ),
    )(fx, w1, w2, w3, bias)

    return out[:, :N].T.reshape(B, S, dx)


# ----------------------------------------------------------------------------
# Deterministic parameter init (PyTorch-style uniform(-1/sqrt(fan_in), +...)).
# ----------------------------------------------------------------------------
def _linear_init(key, fan_in, fan_out):
    kw, kb = jax.random.split(key)
    bound = 1.0 / jnp.sqrt(fan_in)
    w = jax.random.uniform(kw, (fan_in, fan_out), jnp.float32, -bound, bound)
    b = jax.random.uniform(kb, (fan_out,), jnp.float32, -bound, bound)
    return w, b


def make_params(key, *, feature_dim, input_dim, feature_proj_dim, input_proj_dim, hidden_size):
    keys = jax.random.split(key, 8)
    p = {}
    p["wf"], p["bf"] = _linear_init(keys[0], feature_dim, feature_proj_dim)
    p["wx"], p["bx"] = _linear_init(keys[1], input_dim, input_proj_dim)
    cat_dim = feature_proj_dim + input_proj_dim
    p["wt1"], p["bt1"] = _linear_init(keys[2], cat_dim, hidden_size)
    p["wt2"], p["bt2"] = _linear_init(keys[3], hidden_size, hidden_size)
    p["wt3"], p["bt3"] = _linear_init(keys[4], hidden_size, input_dim)
    p["ws1"], p["bs1"] = _linear_init(keys[5], cat_dim, hidden_size)
    p["ws2"], p["bs2"] = _linear_init(keys[6], hidden_size, hidden_size)
    p["ws3"], p["bs3"] = _linear_init(keys[7], hidden_size, input_dim)
    return p


# ----------------------------------------------------------------------------
# References.
# _reference_f32: mirrors the PyTorch forward exactly, full f32 precision.
# _reference_folded: mirrors the folded/fused kernel numerics in pure JAX (any dtype);
#   used (a) in f32 to validate the fold/fuse algebra tightly, (b) in bf16 to validate
#   the Pallas plumbing (layout, slices, padding) tightly.
# ----------------------------------------------------------------------------
def _reference_f32(F, x, p, *, use_difference, include_scaling):
    with jax.default_matmul_precision("highest"):
        fp = F @ p["wf"] + p["bf"]
        xp = x @ p["wx"] + p["bx"]
        Fx = jnp.concatenate([fp, xp], axis=-1)
        h = jnp.maximum(Fx @ p["wt1"] + p["bt1"], 0.0)
        h = jnp.maximum(h @ p["wt2"] + p["bt2"], 0.0)
        t = h @ p["wt3"] + p["bt3"]
        y = x - t if use_difference else t
        if include_scaling:
            hs = jnp.maximum(Fx @ p["ws1"] + p["bs1"], 0.0)
            hs = jnp.maximum(hs @ p["ws2"] + p["bs2"], 0.0)
            s = jnp.clip(hs @ p["ws3"] + p["bs3"], -2.0, 2.0)
            y = y * jnp.exp(-s)
        return y


def _reference_folded(F, x, p, *, use_difference, include_scaling, compute_dtype):
    B, S, df = F.shape
    dx = x.shape[-1]
    N = B * S
    w1, w2, w3, bias = _fold_params(p, include_scaling=include_scaling,
                                    weight_dtype=compute_dtype)
    n_h = w1.shape[0]
    n_o = w3.shape[0]
    fx = jnp.concatenate([x.reshape(N, dx).T, F.reshape(N, df).T], axis=0).astype(compute_dtype)
    b1, b2, b3 = bias[0:n_h], bias[n_h:2 * n_h], bias[2 * n_h:2 * n_h + n_o]
    with jax.default_matmul_precision("highest"):
        h = jnp.dot(w1, fx, preferred_element_type=jnp.float32) + b1
        h = jnp.maximum(h, 0.0).astype(compute_dtype)
        h = jnp.dot(w2, h, preferred_element_type=jnp.float32) + b2
        h = jnp.maximum(h, 0.0).astype(compute_dtype)
        ts = jnp.dot(w3, h, preferred_element_type=jnp.float32) + b3
    t = ts[0:dx]
    y = fx[0:dx].astype(jnp.float32) - t if use_difference else t
    if include_scaling:
        s = jnp.clip(ts[dx:2 * dx], -2.0, 2.0)
        y = y * jnp.exp(-s)
    return y.T.reshape(B, S, dx)


if __name__ == "__main__":
    batch, seq = 2, 8
    feature_dim, input_dim = 16, 4
    feature_proj_dim, input_proj_dim = 8, 8
    hidden_size = 32

    key = jax.random.PRNGKey(0)
    kF, kx, kp = jax.random.split(key, 3)
    F = jax.random.normal(kF, (batch, seq, feature_dim), jnp.float32)
    x = jax.random.normal(kx, (batch, seq, input_dim), jnp.float32)
    params = make_params(kp, feature_dim=feature_dim, input_dim=input_dim,
                         feature_proj_dim=feature_proj_dim,
                         input_proj_dim=input_proj_dim, hidden_size=hidden_size)

    for use_diff, incl_scale in [(True, True), (True, False)]:
        ref = _reference_f32(F, x, params, use_difference=use_diff,
                             include_scaling=incl_scale)

        # (a) fold/fuse algebra check, full f32 (pure JAX, tight).
        alg = _reference_folded(F, x, params, use_difference=use_diff,
                                include_scaling=incl_scale, compute_dtype=jnp.float32)
        err_alg = float(jnp.max(jnp.abs(alg - ref)))
        assert bool(jnp.allclose(alg, ref, atol=1e-4, rtol=1e-4)), \
            f"fold/fuse algebra mismatch (max abs err {err_alg})"

        # (b) Pallas kernel (bf16 production path).
        out = residual_block_forward(F, x, params, use_difference=use_diff,
                                     include_scaling=incl_scale)
        out = jax.block_until_ready(out)
        assert out.shape == (batch, seq, input_dim)

        # tight check vs a pure-JAX mirror of the kernel numerics (bf16 inputs, f32 accum)
        mirror = _reference_folded(F, x, params, use_difference=use_diff,
                                   include_scaling=incl_scale, compute_dtype=jnp.bfloat16)
        err_mir = float(jnp.max(jnp.abs(out - mirror)))
        assert bool(jnp.allclose(out, mirror, atol=5e-3, rtol=5e-3)), \
            f"kernel vs bf16 mirror mismatch (max abs err {err_mir})"

        # loose end-to-end sanity vs the full-precision module semantics
        err_ref = float(jnp.max(jnp.abs(out - ref)))
        assert bool(jnp.allclose(out, ref, atol=1.5e-1, rtol=1e-1)), \
            f"kernel vs f32 reference mismatch (max abs err {err_ref})"

    print("KERNEL_OK")
</pallas_src>

<mosaic_0001>
module attributes {stable_mosaic.version = 11 : i64} {
  func.func @_residual_block_kernel(%arg0: i32, %arg1: memref<20x128xbf16, #tpu.memory_space<vmem>>, %arg2: memref<64x20xbf16, #tpu.memory_space<vmem>>, %arg3: memref<64x64xbf16, #tpu.memory_space<vmem>>, %arg4: memref<8x64xbf16, #tpu.memory_space<vmem>>, %arg5: memref<136x1xf32, #tpu.memory_space<vmem>>, %arg6: memref<4x128xf32, #tpu.memory_space<vmem>>) attributes {dimension_semantics = [#tpu.dimension_semantics<parallel>], iteration_bounds = array<i64: 1>, scalar_prefetch = 0 : i64, scratch_operands = 0 : i64, tpu.core_type = #tpu.core_type<tc>, window_params = [{transform_indices = @transform_0, window_bounds = array<i64: 20, 128>}, {pipeline_mode = #tpu.pipeline_mode<synchronous>, transform_indices = @transform_1, window_bounds = array<i64: 64, 20>}, {pipeline_mode = #tpu.pipeline_mode<synchronous>, transform_indices = @transform_2, window_bounds = array<i64: 64, 64>}, {pipeline_mode = #tpu.pipeline_mode<synchronous>, transform_indices = @transform_3, window_bounds = array<i64: 8, 64>}, {pipeline_mode = #tpu.pipeline_mode<synchronous>, transform_indices = @transform_4, window_bounds = array<i64: 136, 1>}, {transform_indices = @transform_5, window_bounds = array<i64: 4, 128>}]} {
    %c0 = arith.constant 0 : index
    %c0_0 = arith.constant 0 : index
    %0 = vector.load %arg1[%c0, %c0_0] : memref<20x128xbf16, #tpu.memory_space<vmem>>, vector<20x128xbf16>
    %c0_1 = arith.constant 0 : index
    %c0_2 = arith.constant 0 : index
    %1 = vector.load %arg5[%c0_1, %c0_2] : memref<136x1xf32, #tpu.memory_space<vmem>>, vector<64x1xf32>
    %c64 = arith.constant 64 : index
    %c0_3 = arith.constant 0 : index
    %2 = vector.load %arg5[%c64, %c0_3] : memref<136x1xf32, #tpu.memory_space<vmem>>, vector<64x1xf32>
    %c128 = arith.constant 128 : index
    %c0_4 = arith.constant 0 : index
    %3 = vector.load %arg5[%c128, %c0_4] : memref<136x1xf32, #tpu.memory_space<vmem>>, vector<8x1xf32>
    %c0_5 = arith.constant 0 : index
    %c0_6 = arith.constant 0 : index
    %4 = vector.load %arg2[%c0_5, %c0_6] : memref<64x20xbf16, #tpu.memory_space<vmem>>, vector<64x20xbf16>
    %cst = arith.constant dense<0.000000e+00> : vector<64x128xf32>
    %5 = tpu.matmul %4, %0, %cst {dimension_numbers = #tpu.dot_dimension_numbers<[1], [0], [0], [1], [0, 0, 1, 1], [], []>} : vector<64x20xbf16>, vector<20x128xbf16>, vector<64x128xf32> -> vector<64x128xf32>
    %6 = vector.broadcast %1 : vector<64x1xf32> to vector<64x128xf32>
    %7 = arith.addf %5, %6 : vector<64x128xf32>
    %cst_7 = arith.constant 0.000000e+00 : f32
    %8 = vector.broadcast %cst_7 : f32 to vector<64x128xf32>
    %9 = arith.maximumf %7, %8 : vector<64x128xf32>
    %10 = arith.truncf %9 : vector<64x128xf32> to vector<64x128xbf16>
    %c0_8 = arith.constant 0 : index
    %c0_9 = arith.constant 0 : index
    %11 = vector.load %arg3[%c0_8, %c0_9] : memref<64x64xbf16, #tpu.memory_space<vmem>>, vector<64x64xbf16>
    %cst_10 = arith.constant dense<0.000000e+00> : vector<64x128xf32>
    %12 = tpu.matmul %11, %10, %cst_10 {dimension_numbers = #tpu.dot_dimension_numbers<[1], [0], [0], [1], [0, 0, 1, 1], [], []>} : vector<64x64xbf16>, vector<64x128xbf16>, vector<64x128xf32> -> vector<64x128xf32>
    %13 = vector.broadcast %2 : vector<64x1xf32> to vector<64x128xf32>
    %14 = arith.addf %12, %13 : vector<64x128xf32>
    %cst_11 = arith.constant 0.000000e+00 : f32
    %15 = vector.broadcast %cst_11 : f32 to vector<64x128xf32>
    %16 = arith.maximumf %14, %15 : vector<64x128xf32>
    %17 = arith.truncf %16 : vector<64x128xf32> to vector<64x128xbf16>
    %c0_12 = arith.constant 0 : index
    %c0_13 = arith.constant 0 : index
    %18 = vector.load %arg4[%c0_12, %c0_13] : memref<8x64xbf16, #tpu.memory_space<vmem>>, vector<8x64xbf16>
    %cst_14 = arith.constant dense<0.000000e+00> : vector<8x128xf32>
    %19 = tpu.matmul %18, %17, %cst_14 {dimension_numbers = #tpu.dot_dimension_numbers<[1], [0], [0], [1], [0, 0, 1, 1], [], []>} : vector<8x64xbf16>, vector<64x128xbf16>, vector<8x128xf32> -> vector<8x128xf32>
    %20 = vector.broadcast %3 : vector<8x1xf32> to vector<8x128xf32>
    %21 = arith.addf %19, %20 : vector<8x128xf32>
    %22 = vector.extract_strided_slice %21 {offsets = [0, 0], sizes = [4, 128], strides = [1, 1]} : vector<8x128xf32> to vector<4x128xf32>
    %23 = vector.extract_strided_slice %0 {offsets = [0, 0], sizes = [4, 128], strides = [1, 1]} : vector<20x128xbf16> to vector<4x128xbf16>
    %24 = arith.extf %23 : vector<4x128xbf16> to vector<4x128xf32>
    %25 = arith.subf %24, %22 : vector<4x128xf32>
    %26 = vector.extract_strided_slice %21 {offsets = [4, 0], sizes = [4, 128], strides = [1, 1]} : vector<8x128xf32> to vector<4x128xf32>
    %cst_15 = arith.constant -2.000000e+00 : f32
    %cst_16 = arith.constant 2.000000e+00 : f32
    %27 = vector.broadcast %cst_15 : f32 to vector<4x128xf32>
    %28 = arith.maximumf %27, %26 : vector<4x128xf32>
    %29 = vector.broadcast %cst_16 : f32 to vector<4x128xf32>
    %30 = arith.minimumf %29, %28 : vector<4x128xf32>
    %cst_17 = arith.constant 0.000000e+00 : f32
    %31 = vector.broadcast %cst_17 : f32 to vector<4x128xf32>
    %32 = arith.subf %31, %30 : vector<4x128xf32>
    %33 = math.exp %32 : vector<4x128xf32>
    %34 = arith.mulf %25, %33 : vector<4x128xf32>
    %c0_18 = arith.constant 0 : index
    %c0_19 = arith.constant 0 : index
    %35 = vector.load %arg6[%c0_18, %c0_19] : memref<4x128xf32, #tpu.memory_space<vmem>>, vector<4x128xf32>
    tpu.vector_store %arg6[%c0_18, %c0_19], %34 {strides = array<i32>} : memref<4x128xf32, #tpu.memory_space<vmem>>, vector<4x128xf32>,
    return
  }
  func.func @transform_0(%arg0: i32) -> (i32, i32) {
    %c0_i32 = arith.constant 0 : i32
    %c0_i32_0 = arith.constant 0 : i32
    return %c0_i32, %arg0 : i32, i32
  }
  func.func @transform_1(%arg0: i32) -> (i32, i32) {
    %c0_i32 = arith.constant 0 : i32
    %c0_i32_0 = arith.constant 0 : i32
    %c0_i32_1 = arith.constant 0 : i32
    return %c0_i32, %c0_i32_0 : i32, i32
  }
  func.func @transform_2(%arg0: i32) -> (i32, i32) {
    %c0_i32 = arith.constant 0 : i32
    %c0_i32_0 = arith.constant 0 : i32
    %c0_i32_1 = arith.constant 0 : i32
    return %c0_i32, %c0_i32_0 : i32, i32
  }
  func.func @transform_3(%arg0: i32) -> (i32, i32) {
    %c0_i32 = arith.constant 0 : i32
    %c0_i32_0 = arith.constant 0 : i32
    %c0_i32_1 = arith.constant 0 : i32
    return %c0_i32, %c0_i32_0 : i32, i32
  }
  func.func @transform_4(%arg0: i32) -> (i32, i32) {
    %c0_i32 = arith.constant 0 : i32
    %c0_i32_0 = arith.constant 0 : i32
    %c0_i32_1 = arith.constant 0 : i32
    return %c0_i32, %c0_i32_0 : i32, i32
  }
  func.func @transform_5(%arg0: i32) -> (i32, i32) {
    %c0_i32 = arith.constant 0 : i32
    %c0_i32_0 = arith.constant 0 : i32
    return %c0_i32, %arg0 : i32, i32
  }
}

</mosaic_0001>

<llo_original>
// kernel: tpu_custom_call.1
$region0: #{tpu_custom_call.1}
  #allocation0 [shape = 'u32[]', space=smem, size = 0x4, offset = 0x4, fixed_abs, tag = 'smem constant byte address 0x4 - core index']
  #allocation1 [shape = 'u32[144,128]{1,0:T(1,128)}', space=vmem, size = 0x12000, scoped, tag = 'internal scratch']
  %s0 = inlined_call_operand.vmem [shape: bf16[20,128], index: 0, kind: input, shape index: {}]
  %s1 = inlined_call_operand.vmem [shape: bf16[64,20], index: 1, kind: input, shape index: {}]
  %s2 = inlined_call_operand.vmem [shape: bf16[64,64], index: 2, kind: input, shape index: {}]
  %s3 = inlined_call_operand.vmem [shape: bf16[8,64], index: 3, kind: input, shape index: {}]
  %s4 = inlined_call_operand.vmem [shape: f32[136,1], index: 4, kind: input, shape index: {}]
  %s5 = inlined_call_operand.hbm [shape: f32[4,128], index: 5, kind: output, shape index: {}]
  %s6 = sld [smem:[#allocation0]]
  $region30: #{tpu_custom_call.1} parent=0
    _
  %s8 = ssub.s32 1, %s6
  %s9 = scalar_select 0, %s8, %s6
  $region1: #{tpu_custom_call.1} parent=0
    #allocation2 [shape = 'u8[2048]{0}', space=vmem, size = 0x800, scoped, tag = 'output window, operand 0, single buffered']
    #allocation3 [shape = 's32[1]{0}', space=sflag, size = 0x4, scoped, tag = 'scoped memory for tpu_custom_call.1']
    %10 = vsyncpa [#allocation3], 0
    // Predicated region
    $region2: #{tpu_custom_call.1} parent=1 // pred_check
      _
    $region3: #{tpu_custom_call.1} parent=1 // pred_check_branch
      %12 = sbr.rel (0) target = $region5
    $region4: #{tpu_custom_call.1} parent=1 // pred_region
      _
    $region5: #{tpu_custom_call.1} parent=1 // pred_fallthru
      _
    // Predicated region
    $region6: #{tpu_custom_call.1} parent=1 // pred_check
      _
    $region7: #{tpu_custom_call.1} parent=1 // pred_check_branch
      %14 = sbr.rel (0) target = $region9
    $region8: #{tpu_custom_call.1} parent=1 // pred_region
      _
    $region9: #{tpu_custom_call.1} parent=1 // pred_fallthru
      _
    // Predicated region
    $region10: #{tpu_custom_call.1} parent=1 // pred_check
      _
    $region11: #{tpu_custom_call.1} parent=1 // pred_check_branch
      %16 = sbr.rel (0) target = $region13
    $region12: #{tpu_custom_call.1} parent=1 // pred_region
      _
    $region13: #{tpu_custom_call.1} parent=1 // pred_fallthru
      _
    // Predicated region
    $region14: #{tpu_custom_call.1} parent=1 // pred_check
      _
    $region15: #{tpu_custom_call.1} parent=1 // pred_check_branch
      %18 = sbr.rel (0) target = $region17
    $region16: #{tpu_custom_call.1} parent=1 // pred_region
      _
    $region17: #{tpu_custom_call.1} parent=1 // pred_fallthru
      _
    // Predicated region
    $region18: #{tpu_custom_call.1} parent=1 // pred_check
      _
    $region19: #{tpu_custom_call.1} parent=1 // pred_check_branch
      %20 = sbr.rel (0) target = $region21
    $region20: #{tpu_custom_call.1} parent=1 // pred_region
      _
    $region21: #{tpu_custom_call.1} parent=1 // pred_fallthru
      _
    %v22 = vld [vmem:[%s0] sm:$0xf]
    %v23 = vld [vmem:[%s0 + $0x4] sm:$0xf]
    %v24 = vld [vmem:[%s0 + $0x8] sm:$0x3]
    %v25 = vld [vmem:[%s4] sm:$0xff]
    %v26 = vld [vmem:[%s4 + $0x8] sm:$0xff]
    %v27 = vld [vmem:[%s4 + $0x10] sm:$0xff]
    %v28 = vld [vmem:[%s4 + $0x18] sm:$0xff]
    %v29 = vld [vmem:[%s4 + $0x20] sm:$0xff]
    %v30 = vld [vmem:[%s4 + $0x28] sm:$0xff]
    %v31 = vld [vmem:[%s4 + $0x30] sm:$0xff]
    %v32 = vld [vmem:[%s4 + $0x38] sm:$0xff]
    %v33 = vld [vmem:[%s4 + $0x40] sm:$0xff]
    %v34 = vld [vmem:[%s4 + $0x48] sm:$0xff]
    %v35 = vld [vmem:[%s4 + $0x50] sm:$0xff]
    %v36 = vld [vmem:[%s4 + $0x58] sm:$0xff]
    %v37 = vld [vmem:[%s4 + $0x60] sm:$0xff]
    %v38 = vld [vmem:[%s4 + $0x68] sm:$0xff]
    %v39 = vld [vmem:[%s4 + $0x70] sm:$0xff]
    %v40 = vld [vmem:[%s4 + $0x78] sm:$0xff]
    %v41 = vld [vmem:[%s4 + $0x80] sm:$0xff]
    %v42 = vld [vmem:[%s1] sm:$0xf]
    %v43 = vld [vmem:[%s1 + $0x4] sm:$0xf]
    %v44 = vld [vmem:[%s1 + $0x8] sm:$0xf]
    %v45 = vld [vmem:[%s1 + $0xc] sm:$0xf]
    %v46 = vld [vmem:[%s1 + $0x10] sm:$0xf]
    %v47 = vld [vmem:[%s1 + $0x14] sm:$0xf]
    %v48 = vld [vmem:[%s1 + $0x18] sm:$0xf]
    %v49 = vld [vmem:[%s1 + $0x1c] sm:$0xf]
    %51 = vset.pattern.permute.xlu0 0
    %52 = vperm.xlu0 %51, %v25
    %v53 = vpop.permute.xlu0 %52
    %56 = vset.pattern.permute.xlu0 0
    %57 = vperm.xlu0 %56, %v26
    %v58 = vpop.permute.xlu0 %57
    %61 = vset.pattern.permute.xlu0 0
    %62 = vperm.xlu0 %61, %v27
    %v63 = vpop.permute.xlu0 %62
    %66 = vset.pattern.permute.xlu0 0
    %67 = vperm.xlu0 %66, %v28
    %v68 = vpop.permute.xlu0 %67
    %71 = vset.pattern.permute.xlu0 0
    %72 = vperm.xlu0 %71, %v29
    %v73 = vpop.permute.xlu0 %72
    %76 = vset.pattern.permute.xlu0 0
    %77 = vperm.xlu0 %76, %v30
    %v78 = vpop.permute.xlu0 %77
    %81 = vset.pattern.permute.xlu0 0
    %82 = vperm.xlu0 %81, %v31
    %v83 = vpop.permute.xlu0 %82
    %86 = vset.pattern.permute.xlu0 0
    %87 = vperm.xlu0 %86, %v32
    %v88 = vpop.permute.xlu0 %87
    %v98 = vunpack.c.l.b16 %v42
    %v99 = vunpack.c.l.b16 %v43
    %v100 = vunpack.c.l.b16 %v44
    %v101 = vunpack.c.l.b16 %v45
    %v102 = vunpack.c.l.b16 %v46
    %v103 = vunpack.c.l.b16 %v47
    %v104 = vunpack.c.l.b16 %v48
    %v105 = vunpack.c.l.b16 %v49
    %v106 = vpack.c.b16 %v99, %v98
    %v107 = vpack.c.b16 %v101, %v100
    %v108 = vpack.c.b16 %v103, %v102
    %v109 = vpack.c.b16 %v105, %v104
    %v113 = vunpack.c.l.b16 %v22
    %v114 = vunpack.c.l.b16 %v23
    %v115 = vunpack.c.l.b16 %v24
    %v116 = vpack.c.b16 %v114, %v113
    %v117 = vpack.c.b16 %v115, %v115
    %vm119 = vcmask 162816
    %v121 = vsel %vm119, %v106, 0
    %v124 = vsel %vm119, %v107, 0
    %v127 = vsel %vm119, %v108, 0
    %v130 = vsel %vm119, %v109, 0
    %vm132 = vcmask 1041408
    %v134 = vsel %vm132, %v117, 0
    %136 = vmatprep.subr.bf16.mxu0 0
    %137 = vmatpush1.bf16.msra.mxu0 0
    %138 = vmatprep.subr.bf16.mxu0 0
    %139 = vmatpush1.bf16.msra.mxu0 0
    %140 = vmatprep.subr.bf16.mxu0 0
    %141 = vmatpush1.bf16.msra.mxu0 0
    %142 = vmatprep.subr.bf16.mxu0 0
    %143 = vmatpush1.bf16.msra.mxu0 0
    %144 = vmatprep.subr.bf16.mxu0 0
    %145 = vmatpush1.bf16.msra.mxu0 0
    %146 = vmatprep.subr.bf16.mxu0 0
    %147 = vmatpush1.bf16.msra.mxu0 0
    %148 = vmatprep.subr.bf16.mxu0 0
    %149 = vmatpush1.bf16.msra.mxu0 %v134
    %150 = vmatprep.subr.bf16.mxu0 0
    %151 = vmatpush1.bf16.msra.mxu0 %v116
    %152 = vmatprep.subr.bf16.mxu0 0
    %153 = vmatpush2.bf16.msra.mxu0 0
    %154 = vmatprep.subr.bf16.mxu0 0
    %155 = vmatpush2.bf16.msra.mxu0 0
    %156 = vmatprep.subr.bf16.mxu0 0
    %157 = vmatpush2.bf16.msra.mxu0 0
    %158 = vmatprep.subr.bf16.mxu0 0
    %159 = vmatpush2.bf16.msra.mxu0 0
    %160 = vmatprep.subr.bf16.mxu0 0
    %161 = vmatpush2.bf16.msra.mxu0 0
    %162 = vmatprep.subr.bf16.mxu0 0
    %163 = vmatpush2.bf16.msra.mxu0 0
    %164 = vmatprep.subr.bf16.mxu0 0
    %165 = vmatpush2.bf16.msra.mxu0 0
    %166 = vmatprep.subr.bf16.mxu0 0
    %167 = vmatpush2.bf16.msra.mxu0 0
    %168 = vmatprep.mubr.bf16.mxu0 0
    %169 = vmatmul.mubr.bf16.gmra.mxu0 %v121
    %v170 = vpop.f32.mrf.mxu0
    %v171 = vadd.f32 %v53, %v170
    %v172 = vpop.f32.mrf.mxu0
    %v173 = vpop.f32.mrf.mxu0
    %v174 = vadd.f32 %v58, %v173
    %v175 = vpop.f32.mrf.mxu0
    %176 = vmatprep.mubr.bf16.mxu0 0
    %177 = vmatmul.mubr.bf16.gmra.mxu0 %v124
    %v178 = vpop.f32.mrf.mxu0
    %v179 = vadd.f32 %v63, %v178
    %v180 = vpop.f32.mrf.mxu0
    %v181 = vpop.f32.mrf.mxu0
    %v182 = vadd.f32 %v68, %v181
    %v183 = vpop.f32.mrf.mxu0
    %184 = vmatprep.mubr.bf16.mxu0 0
    %185 = vmatmul.mubr.bf16.gmra.mxu0 %v127
    %v186 = vpop.f32.mrf.mxu0
    %v187 = vadd.f32 %v73, %v186
    %v188 = vpop.f32.mrf.mxu0
    %v189 = vpop.f32.mrf.mxu0
    %v190 = vadd.f32 %v78, %v189
    %v191 = vpop.f32.mrf.mxu0
    %192 = vmatprep.mubr.bf16.mxu0 0
    %193 = vmatmul.mubr.bf16.gmra.mxu0 %v130
    %v194 = vpop.f32.mrf.mxu0
    %v195 = vadd.f32 %v83, %v194
    %v196 = vpop.f32.mrf.mxu0
    %v197 = vpop.f32.mrf.mxu0
    %v198 = vadd.f32 %v88, %v197
    %v199 = vpop.f32.mrf.mxu0
    %200 = vdwg.mxu0
    %v201 = vmax.f32 %v171, 0.0
    %v202 = vmax.f32 %v174, 0.0
    %v203 = vmax.f32 %v179, 0.0
    %v204 = vmax.f32 %v182, 0.0
    %v205 = vmax.f32 %v187, 0.0
    %v206 = vmax.f32 %v190, 0.0
    %v207 = vmax.f32 %v195, 0.0
    %v208 = vmax.f32 %v198, 0.0
    %v209 = vpack.c.bf16 %v202, %v201
    %v210 = vpack.c.bf16 %v204, %v203
    %v211 = vpack.c.bf16 %v206, %v205
    %v212 = vpack.c.bf16 %v208, %v207
    %v213 = vld [vmem:[%s2] sm:$0xf]
    %v214 = vld [vmem:[%s2 + $0x4] sm:$0xf]
    %v215 = vld [vmem:[%s2 + $0x8] sm:$0xf]
    %v216 = vld [vmem:[%s2 + $0xc] sm:$0xf]
    %v217 = vld [vmem:[%s2 + $0x10] sm:$0xf]
    %v218 = vld [vmem:[%s2 + $0x14] sm:$0xf]
    %v219 = vld [vmem:[%s2 + $0x18] sm:$0xf]
    %v220 = vld [vmem:[%s2 + $0x1c] sm:$0xf]
    %222 = vset.pattern.permute.xlu0 0
    %223 = vperm.xlu0 %222, %v33
    %v224 = vpop.permute.xlu0 %223
    %227 = vset.pattern.permute.xlu0 0
    %228 = vperm.xlu0 %227, %v34
    %v229 = vpop.permute.xlu0 %228
    %232 = vset.pattern.permute.xlu0 0
    %233 = vperm.xlu0 %232, %v35
    %v234 = vpop.permute.xlu0 %233
    %237 = vset.pattern.permute.xlu0 0
    %238 = vperm.xlu0 %237, %v36
    %v239 = vpop.permute.xlu0 %238
    %242 = vset.pattern.permute.xlu0 0
    %243 = vperm.xlu0 %242, %v37
    %v244 = vpop.permute.xlu0 %243
    %247 = vset.pattern.permute.xlu0 0
    %248 = vperm.xlu0 %247, %v38
    %v249 = vpop.permute.xlu0 %248
    %252 = vset.pattern.permute.xlu0 0
    %253 = vperm.xlu0 %252, %v39
    %v254 = vpop.permute.xlu0 %253
    %257 = vset.pattern.permute.xlu0 0
    %258 = vperm.xlu0 %257, %v40
    %v259 = vpop.permute.xlu0 %258
    %v269 = vunpack.c.l.b16 %v213
    %v270 = vunpack.c.l.b16 %v214
    %v271 = vunpack.c.l.b16 %v215
    %v272 = vunpack.c.l.b16 %v216
    %v273 = vunpack.c.l.b16 %v217
    %v274 = vunpack.c.l.b16 %v218
    %v275 = vunpack.c.l.b16 %v219
    %v276 = vunpack.c.l.b16 %v220
    %v277 = vpack.c.b16 %v270, %v269
    %v278 = vpack.c.b16 %v272, %v271
    %v279 = vpack.c.b16 %v274, %v273
    %v280 = vpack.c.b16 %v276, %v275
    %vm281 = vcmask 523264
    %v283 = vsel %vm281, %v277, 0
    %v286 = vsel %vm281, %v278, 0
    %v289 = vsel %vm281, %v279, 0
    %v292 = vsel %vm281, %v280, 0
    %294 = vmatprep.subr.bf16.mxu0 0
    %295 = vmatpush1.bf16.msra.mxu0 0
    %296 = vmatprep.subr.bf16.mxu0 0
    %297 = vmatpush1.bf16.msra.mxu0 0
    %298 = vmatprep.subr.bf16.mxu0 0
    %299 = vmatpush1.bf16.msra.mxu0 0
    %300 = vmatprep.subr.bf16.mxu0 0
    %301 = vmatpush1.bf16.msra.mxu0 0
    %302 = vmatprep.subr.bf16.mxu0 0
    %303 = vmatpush1.bf16.msra.mxu0 %v212
    %304 = vmatprep.subr.bf16.mxu0 0
    %305 = vmatpush1.bf16.msra.mxu0 %v211
    %306 = vmatprep.subr.bf16.mxu0 0
    %307 = vmatpush1.bf16.msra.mxu0 %v210
    %308 = vmatprep.subr.bf16.mxu0 0
    %309 = vmatpush1.bf16.msra.mxu0 %v209
    %310 = vmatprep.subr.bf16.mxu0 0
    %311 = vmatpush2.bf16.msra.mxu0 0
    %312 = vmatprep.subr.bf16.mxu0 0
    %313 = vmatpush2.bf16.msra.mxu0 0
    %314 = vmatprep.subr.bf16.mxu0 0
    %315 = vmatpush2.bf16.msra.mxu0 0
    %316 = vmatprep.subr.bf16.mxu0 0
    %317 = vmatpush2.bf16.msra.mxu0 0
    %318 = vmatprep.subr.bf16.mxu0 0
    %319 = vmatpush2.bf16.msra.mxu0 0
    %320 = vmatprep.subr.bf16.mxu0 0
    %321 = vmatpush2.bf16.msra.mxu0 0
    %322 = vmatprep.subr.bf16.mxu0 0
    %323 = vmatpush2.bf16.msra.mxu0 0
    %324 = vmatprep.subr.bf16.mxu0 0
    %325 = vmatpush2.bf16.msra.mxu0 0
    %326 = vmatprep.mubr.bf16.mxu0 0
    %327 = vmatmul.mubr.bf16.gmra.mxu0 %v283
    %v328 = vpop.f32.mrf.mxu0
    %v329 = vadd.f32 %v224, %v328
    %v330 = vpop.f32.mrf.mxu0
    %v331 = vpop.f32.mrf.mxu0
    %v332 = vadd.f32 %v229, %v331
    %v333 = vpop.f32.mrf.mxu0
    %334 = vmatprep.mubr.bf16.mxu0 0
    %335 = vmatmul.mubr.bf16.gmra.mxu0 %v286
    %v336 = vpop.f32.mrf.mxu0
    %v337 = vadd.f32 %v234, %v336
    %v338 = vpop.f32.mrf.mxu0
    %v339 = vpop.f32.mrf.mxu0
    %v340 = vadd.f32 %v239, %v339
    %v341 = vpop.f32.mrf.mxu0
    %342 = vmatprep.mubr.bf16.mxu0 0
    %343 = vmatmul.mubr.bf16.gmra.mxu0 %v289
    %v344 = vpop.f32.mrf.mxu0
    %v345 = vadd.f32 %v244, %v344
    %v346 = vpop.f32.mrf.mxu0
    %v347 = vpop.f32.mrf.mxu0
    %v348 = vadd.f32 %v249, %v347
    %v349 = vpop.f32.mrf.mxu0
    %350 = vmatprep.mubr.bf16.mxu0 0
    %351 = vmatmul.mubr.bf16.gmra.mxu0 %v292
    %v352 = vpop.f32.mrf.mxu0
    %v353 = vadd.f32 %v254, %v352
    %v354 = vpop.f32.mrf.mxu0
    %v355 = vpop.f32.mrf.mxu0
    %v356 = vadd.f32 %v259, %v355
    %v357 = vpop.f32.mrf.mxu0
    %358 = vdwg.mxu0
    %v359 = vmax.f32 %v329, 0.0
    %v360 = vmax.f32 %v332, 0.0
    %v361 = vmax.f32 %v337, 0.0
    %v362 = vmax.f32 %v340, 0.0
    %v363 = vmax.f32 %v345, 0.0
    %v364 = vmax.f32 %v348, 0.0
    %v365 = vmax.f32 %v353, 0.0
    %v366 = vmax.f32 %v356, 0.0
    %v367 = vpack.c.bf16 %v360, %v359
    %v368 = vpack.c.bf16 %v362, %v361
    %v369 = vpack.c.bf16 %v364, %v363
    %v370 = vpack.c.bf16 %v366, %v365
    %v371 = vld [vmem:[%s3] sm:$0xf]
    %373 = vset.pattern.permute.xlu0 0
    %374 = vperm.xlu0 %373, %v41
    %v375 = vpop.permute.xlu0 %374
    %v378 = vsel %vm281, %v371, 0
    %380 = vmatprep.subr.bf16.mxu0 0
    %381 = vmatpush1.bf16.msra.mxu0 0
    %382 = vmatprep.subr.bf16.mxu0 0
    %383 = vmatpush1.bf16.msra.mxu0 0
    %384 = vmatprep.subr.bf16.mxu0 0
    %385 = vmatpush1.bf16.msra.mxu0 0
    %386 = vmatprep.subr.bf16.mxu0 0
    %387 = vmatpush1.bf16.msra.mxu0 0
    %388 = vmatprep.subr.bf16.mxu0 0
    %389 = vmatpush1.bf16.msra.mxu0 %v370
    %390 = vmatprep.subr.bf16.mxu0 0
    %391 = vmatpush1.bf16.msra.mxu0 %v369
    %392 = vmatprep.subr.bf16.mxu0 0
    %393 = vmatpush1.bf16.msra.mxu0 %v368
    %394 = vmatprep.subr.bf16.mxu0 0
    %395 = vmatpush1.bf16.msra.mxu0 %v367
    %396 = vmatprep.subr.bf16.mxu0 0
    %397 = vmatpush2.bf16.msra.mxu0 0
    %398 = vmatprep.subr.bf16.mxu0 0
    %399 = vmatpush2.bf16.msra.mxu0 0
    %400 = vmatprep.subr.bf16.mxu0 0
    %401 = vmatpush2.bf16.msra.mxu0 0
    %402 = vmatprep.subr.bf16.mxu0 0
    %403 = vmatpush2.bf16.msra.mxu0 0
    %404 = vmatprep.subr.bf16.mxu0 0
    %405 = vmatpush2.bf16.msra.mxu0 0
    %406 = vmatprep.subr.bf16.mxu0 0
    %407 = vmatpush2.bf16.msra.mxu0 0
    %408 = vmatprep.subr.bf16.mxu0 0
    %409 = vmatpush2.bf16.msra.mxu0 0
    %410 = vmatprep.subr.bf16.mxu0 0
    %411 = vmatpush2.bf16.msra.mxu0 0
    %412 = vmatprep.mubr.bf16.mxu0 0
    %413 = vmatmul.mubr.bf16.gmra.mxu0 %v378
    %v414 = vpop.f32.mrf.mxu0
    %v415 = vadd.f32 %v375, %v414
    %v416 = vpop.f32.mrf.mxu0
    %v417 = vpop.f32.mrf.mxu0
    %v418 = vpop.f32.mrf.mxu0
    %419 = vdwg.mxu0
    %v420 = vunpack.c.l.bf16 %v22
    %v421 = vsub.f32 %v420, %v415
    %v422 = vmax.f32 %v415, -2.0
    %v423 = vmin.f32 %v422, 2.0
    %v424 = vsub.f32 0.0, %v423
    %v425 = vmul.f32 %v424, 1.442695
    %v426 = vpow.pop %v425
    %v428 = vrot.slane %v426, 4
    %v430 = vmul.f32 %v421, %v428
    %431 = vst [vmem:[#allocation2] sm:$0xf] %v430
    // Predicated region
    $region22: #{tpu_custom_call.1} parent=1 // pred_check
      _
    $region23: #{tpu_custom_call.1} parent=1 // pred_check_branch
      %433 = sbr.rel (0) target = $region25
    $region24: #{tpu_custom_call.1} parent=1 // pred_region
      %s435 = ssub.s32 64, 64
      %436 = vsyncadd [#allocation3], %s435
      %s438 = sshll.u32 [#allocation2], 4
      %s439 = int_to_ptr.vmem [resolvable:$true] %s438
      %441 = dma.vmem_to_hbm [thread:$0]  %s439, 64, %s5, [#allocation3]
    $region25: #{tpu_custom_call.1} parent=1 // pred_fallthru
      _
    // Predicated region
    $region26: #{tpu_custom_call.1} parent=1 // pred_check
      _
    $region27: #{tpu_custom_call.1} parent=1 // pred_check_branch
      %443 = sbr.rel (0) target = $region29
    $region28: #{tpu_custom_call.1} parent=1 // pred_region
      %444 = dma.done [#allocation3], 64
    $region29: #{tpu_custom_call.1} parent=1 // pred_fallthru
      _
    %445 = vsyncpa [#allocation3], 1

</llo_original>
